<compile_context>
chip_gen: v6e
topology: v6e:2x2x1
jax: 0.10.0
libtpu: 0.0.40
codegen_flags: <defaults>
</compile_context>

<pallas_src>
import jax
import jax.numpy as jnp
from jax.experimental import pallas as pl
from jax.experimental.pallas import tpu as pltpu


def insurance_net_kernel(xt_ref, w1_ref, b1_ref, w2_ref, b2_ref, ot_ref):
    # xt_ref: (23, TB)   float32   -- input tile, batch on the lane axis
    # w1_ref: (15, 23)   float32   -- PyTorch fc1.weight layout [out, in]
    # b1_ref: (15, 1)    float32
    # w2_ref: (2, 15)    float32   -- PyTorch fc2.weight layout [out, in]
    # b2_ref: (2, 1)     float32
    # ot_ref: (2, TB)    float32   -- transposed output tile (lane-dense)
    xt = xt_ref[...]
    h = jnp.dot(w1_ref[...], xt, preferred_element_type=jnp.float32) + b1_ref[...]
    h = jnp.maximum(h, 0.0)  # ReLU (fc1 activation)
    y = jnp.dot(w2_ref[...], h, preferred_element_type=jnp.float32) + b2_ref[...]
    ot_ref[...] = y.astype(ot_ref.dtype)


def insurance_net_forward(x, w1, b1, w2, b2, *, max_tile=512):
    """x: (B, 23); w1: (15, 23); b1: (15,); w2: (2, 15); b2: (2,). Returns (B, 2)."""
    B, in_f = x.shape
    hid = w1.shape[0]     # 15
    out_f = w2.shape[0]   # 2

    # Batch tile: multiple of 128 (lane width), capped so weights + 2x-buffered
    # tiles stay comfortably inside even v7x's scoped VMEM.
    tb = min(max_tile, 128 * pl.cdiv(B, 128))
    b_pad = tb * pl.cdiv(B, tb)

    # Layout plumbing only: transpose/pad the input so the batch is lane-dense.
    xt = jnp.zeros((in_f, b_pad), x.dtype).at[:, :B].set(x.T)
    b1c = b1.reshape(hid, 1)
    b2c = b2.reshape(out_f, 1)

    yt = pl.pallas_call(
        insurance_net_kernel,
        out_shape=jax.ShapeDtypeStruct((out_f, b_pad), jnp.float32),
        grid=(b_pad // tb,),
        in_specs=[
            pl.BlockSpec((in_f, tb), lambda i: (0, i)),    # x tile, batch-tiled
            pl.BlockSpec((hid, in_f), lambda i: (0, 0)),   # w1 resident
            pl.BlockSpec((hid, 1), lambda i: (0, 0)),      # b1 resident
            pl.BlockSpec((out_f, hid), lambda i: (0, 0)),  # w2 resident
            pl.BlockSpec((out_f, 1), lambda i: (0, 0)),    # b2 resident
        ],
        out_specs=pl.BlockSpec((out_f, tb), lambda i: (0, i)),
        compiler_params=pltpu.CompilerParams(
            dimension_semantics=("parallel",)),
    )(xt, w1, b1c, w2, b2c)

    return yt[:, :B].T


def init_params(key):
    # Deterministic init mimicking PyTorch's nn.Linear default:
    # U(-1/sqrt(fan_in), 1/sqrt(fan_in)); weights kept in [out, in] layout.
    k1, k2, k3, k4 = jax.random.split(key, 4)
    bound1 = 1.0 / jnp.sqrt(23.0)
    bound2 = 1.0 / jnp.sqrt(15.0)
    w1 = jax.random.uniform(k1, (15, 23), jnp.float32, -bound1, bound1)
    b1 = jax.random.uniform(k2, (15,), jnp.float32, -bound1, bound1)
    w2 = jax.random.uniform(k3, (2, 15), jnp.float32, -bound2, bound2)
    b2 = jax.random.uniform(k4, (2,), jnp.float32, -bound2, bound2)
    return w1, b1, w2, b2


def _reference(x, w1, b1, w2, b2):
    h = jnp.maximum(x @ w1.T + b1, 0.0)
    return h @ w2.T + b2


if __name__ == "__main__":
    key = jax.random.PRNGKey(0)
    k_x, k_x2, k_p = jax.random.split(key, 3)
    w1, b1, w2, b2 = init_params(k_p)

    # Small batch (matches the module's expected [batch, 23] input).
    batch = 8
    x = jax.random.normal(k_x, (batch, 23), dtype=jnp.float32)
    out = insurance_net_forward(x, w1, b1, w2, b2)
    jax.block_until_ready(out)
    assert out.shape == (batch, 2)
    assert jnp.allclose(out, _reference(x, w1, b1, w2, b2), atol=1e-5, rtol=1e-5)

    # Non-multiple-of-tile batch to exercise padding + multi-step grid.
    batch2 = 300
    x2 = jax.random.normal(k_x2, (batch2, 23), dtype=jnp.float32)
    out2 = insurance_net_forward(x2, w1, b1, w2, b2, max_tile=128)
    jax.block_until_ready(out2)
    assert out2.shape == (batch2, 2)
    assert jnp.allclose(out2, _reference(x2, w1, b1, w2, b2), atol=1e-5, rtol=1e-5)

    print("KERNEL_OK")
</pallas_src>

<mosaic_0001>
module attributes {stable_mosaic.version = 11 : i64} {
  func.func @insurance_net_kernel(%arg0: i32, %arg1: memref<23x128xf32, #tpu.memory_space<vmem>>, %arg2: memref<15x23xf32, #tpu.memory_space<vmem>>, %arg3: memref<15x1xf32, #tpu.memory_space<vmem>>, %arg4: memref<2x15xf32, #tpu.memory_space<vmem>>, %arg5: memref<2x1xf32, #tpu.memory_space<vmem>>, %arg6: memref<2x128xf32, #tpu.memory_space<vmem>>) attributes {dimension_semantics = [#tpu.dimension_semantics<parallel>], iteration_bounds = array<i64: 1>, scalar_prefetch = 0 : i64, scratch_operands = 0 : i64, tpu.core_type = #tpu.core_type<tc>, window_params = [{transform_indices = @transform_0, window_bounds = array<i64: 23, 128>}, {pipeline_mode = #tpu.pipeline_mode<synchronous>, transform_indices = @transform_1, window_bounds = array<i64: 15, 23>}, {pipeline_mode = #tpu.pipeline_mode<synchronous>, transform_indices = @transform_2, window_bounds = array<i64: 15, 1>}, {pipeline_mode = #tpu.pipeline_mode<synchronous>, transform_indices = @transform_3, window_bounds = array<i64: 2, 15>}, {pipeline_mode = #tpu.pipeline_mode<synchronous>, transform_indices = @transform_4, window_bounds = array<i64: 2, 1>}, {transform_indices = @transform_5, window_bounds = array<i64: 2, 128>}]} {
    %c0 = arith.constant 0 : index
    %c0_0 = arith.constant 0 : index
    %0 = vector.load %arg1[%c0, %c0_0] : memref<23x128xf32, #tpu.memory_space<vmem>>, vector<23x128xf32>
    %c0_1 = arith.constant 0 : index
    %c0_2 = arith.constant 0 : index
    %1 = vector.load %arg2[%c0_1, %c0_2] : memref<15x23xf32, #tpu.memory_space<vmem>>, vector<15x23xf32>
    %cst = arith.constant dense<0.000000e+00> : vector<15x128xf32>
    %2 = tpu.matmul %1, %0, %cst {dimension_numbers = #tpu.dot_dimension_numbers<[1], [0], [0], [1], [0, 0, 1, 1], [], []>} : vector<15x23xf32>, vector<23x128xf32>, vector<15x128xf32> -> vector<15x128xf32>
    %c0_3 = arith.constant 0 : index
    %c0_4 = arith.constant 0 : index
    %3 = vector.load %arg3[%c0_3, %c0_4] : memref<15x1xf32, #tpu.memory_space<vmem>>, vector<15x1xf32>
    %4 = vector.broadcast %3 : vector<15x1xf32> to vector<15x128xf32>
    %5 = arith.addf %2, %4 : vector<15x128xf32>
    %cst_5 = arith.constant 0.000000e+00 : f32
    %6 = vector.broadcast %cst_5 : f32 to vector<15x128xf32>
    %7 = arith.maximumf %5, %6 : vector<15x128xf32>
    %c0_6 = arith.constant 0 : index
    %c0_7 = arith.constant 0 : index
    %8 = vector.load %arg4[%c0_6, %c0_7] : memref<2x15xf32, #tpu.memory_space<vmem>>, vector<2x15xf32>
    %cst_8 = arith.constant dense<0.000000e+00> : vector<2x128xf32>
    %9 = tpu.matmul %8, %7, %cst_8 {dimension_numbers = #tpu.dot_dimension_numbers<[1], [0], [0], [1], [0, 0, 1, 1], [], []>} : vector<2x15xf32>, vector<15x128xf32>, vector<2x128xf32> -> vector<2x128xf32>
    %c0_9 = arith.constant 0 : index
    %c0_10 = arith.constant 0 : index
    %10 = vector.load %arg5[%c0_9, %c0_10] : memref<2x1xf32, #tpu.memory_space<vmem>>, vector<2x1xf32>
    %11 = vector.broadcast %10 : vector<2x1xf32> to vector<2x128xf32>
    %12 = arith.addf %9, %11 : vector<2x128xf32>
    %c0_11 = arith.constant 0 : index
    %c0_12 = arith.constant 0 : index
    %13 = vector.load %arg6[%c0_11, %c0_12] : memref<2x128xf32, #tpu.memory_space<vmem>>, vector<2x128xf32>
    tpu.vector_store %arg6[%c0_11, %c0_12], %12 {strides = array<i32>} : memref<2x128xf32, #tpu.memory_space<vmem>>, vector<2x128xf32>,
    return
  }
  func.func @transform_0(%arg0: i32) -> (i32, i32) {
    %c0_i32 = arith.constant 0 : i32
    %c0_i32_0 = arith.constant 0 : i32
    return %c0_i32, %arg0 : i32, i32
  }
  func.func @transform_1(%arg0: i32) -> (i32, i32) {
    %c0_i32 = arith.constant 0 : i32
    %c0_i32_0 = arith.constant 0 : i32
    %c0_i32_1 = arith.constant 0 : i32
    return %c0_i32, %c0_i32_0 : i32, i32
  }
  func.func @transform_2(%arg0: i32) -> (i32, i32) {
    %c0_i32 = arith.constant 0 : i32
    %c0_i32_0 = arith.constant 0 : i32
    %c0_i32_1 = arith.constant 0 : i32
    return %c0_i32, %c0_i32_0 : i32, i32
  }
  func.func @transform_3(%arg0: i32) -> (i32, i32) {
    %c0_i32 = arith.constant 0 : i32
    %c0_i32_0 = arith.constant 0 : i32
    %c0_i32_1 = arith.constant 0 : i32
    return %c0_i32, %c0_i32_0 : i32, i32
  }
  func.func @transform_4(%arg0: i32) -> (i32, i32) {
    %c0_i32 = arith.constant 0 : i32
    %c0_i32_0 = arith.constant 0 : i32
    %c0_i32_1 = arith.constant 0 : i32
    return %c0_i32, %c0_i32_0 : i32, i32
  }
  func.func @transform_5(%arg0: i32) -> (i32, i32) {
    %c0_i32 = arith.constant 0 : i32
    %c0_i32_0 = arith.constant 0 : i32
    return %c0_i32, %arg0 : i32, i32
  }
}

</mosaic_0001>

<llo_original>
// kernel: tpu_custom_call.1
$region0: #{tpu_custom_call.1}
  #allocation0 [shape = 'u32[]', space=smem, size = 0x4, offset = 0x4, fixed_abs, tag = 'smem constant byte address 0x4 - core index']
  #allocation1 [shape = 'u32[144,128]{1,0:T(1,128)}', space=vmem, size = 0x12000, scoped, tag = 'internal scratch']
  %s0 = inlined_call_operand.hbm [shape: f32[23,128], index: 0, kind: input, shape index: {}]
  %s1 = inlined_call_operand.vmem [shape: f32[15,23], index: 1, kind: input, shape index: {}]
  %s2 = inlined_call_operand.vmem [shape: f32[15,1], index: 2, kind: input, shape index: {}]
  %s3 = inlined_call_operand.vmem [shape: f32[2,15], index: 3, kind: input, shape index: {}]
  %s4 = inlined_call_operand.vmem [shape: f32[2,1], index: 4, kind: input, shape index: {}]
  %s5 = inlined_call_operand.hbm [shape: f32[2,128], index: 5, kind: output, shape index: {}]
  %s6 = sld [smem:[#allocation0]]
  $region34: #{tpu_custom_call.1} parent=0
    _
  %s8 = ssub.s32 1, %s6
  %s9 = scalar_select 0, %s8, %s6
  $region1: #{tpu_custom_call.1} parent=0
    #allocation2 [shape = 'u8[12288]{0}', space=vmem, size = 0x3000, scoped, tag = 'input window, operand 0, single buffered']
    #allocation3 [shape = 's32[1]{0}', space=sflag, size = 0x4, scoped, tag = 'scoped memory for tpu_custom_call.1']
    #allocation4 [shape = 's32[1]{0}', space=sflag, size = 0x4, scoped, tag = 'scoped memory for tpu_custom_call.1']
    #allocation5 [shape = 'u8[1024]{0}', space=vmem, size = 0x400, scoped, tag = 'output window, operand 0, single buffered']
    %10 = vsyncpa [#allocation3], 0
    %11 = vsyncpa [#allocation4], 0
    // Predicated region
    $region2: #{tpu_custom_call.1} parent=1 // pred_check
      _
    $region3: #{tpu_custom_call.1} parent=1 // pred_check_branch
      %13 = sbr.rel (0) target = $region5
    $region4: #{tpu_custom_call.1} parent=1 // pred_region
      %s15 = ssub.s32 384, 384
      %16 = vsyncadd [#allocation3], %s15
      %s17 = sshll.u32 [#allocation2], 4
      %s18 = int_to_ptr.vmem [resolvable:$true] %s17
      %23 = dma.hbm_to_vmem [thread:$0]  %s0, 384, %s18, [#allocation3], 128, 128, 8
    $region5: #{tpu_custom_call.1} parent=1 // pred_fallthru
      _
    // Predicated region
    $region6: #{tpu_custom_call.1} parent=1 // pred_check
      _
    $region7: #{tpu_custom_call.1} parent=1 // pred_check_branch
      %25 = sbr.rel (0) target = $region9
    $region8: #{tpu_custom_call.1} parent=1 // pred_region
      _
    $region9: #{tpu_custom_call.1} parent=1 // pred_fallthru
      _
    // Predicated region
    $region10: #{tpu_custom_call.1} parent=1 // pred_check
      _
    $region11: #{tpu_custom_call.1} parent=1 // pred_check_branch
      %27 = sbr.rel (0) target = $region13
    $region12: #{tpu_custom_call.1} parent=1 // pred_region
      _
    $region13: #{tpu_custom_call.1} parent=1 // pred_fallthru
      _
    // Predicated region
    $region14: #{tpu_custom_call.1} parent=1 // pred_check
      _
    $region15: #{tpu_custom_call.1} parent=1 // pred_check_branch
      %29 = sbr.rel (0) target = $region17
    $region16: #{tpu_custom_call.1} parent=1 // pred_region
      _
    $region17: #{tpu_custom_call.1} parent=1 // pred_fallthru
      _
    // Predicated region
    $region18: #{tpu_custom_call.1} parent=1 // pred_check
      _
    $region19: #{tpu_custom_call.1} parent=1 // pred_check_branch
      %31 = sbr.rel (0) target = $region21
    $region20: #{tpu_custom_call.1} parent=1 // pred_region
      _
    $region21: #{tpu_custom_call.1} parent=1 // pred_fallthru
      _
    // Predicated region
    $region22: #{tpu_custom_call.1} parent=1 // pred_check
      _
    $region23: #{tpu_custom_call.1} parent=1 // pred_check_branch
      %33 = sbr.rel (0) target = $region25
    $region24: #{tpu_custom_call.1} parent=1 // pred_region
      %34 = dma.done [#allocation3], 384
    $region25: #{tpu_custom_call.1} parent=1 // pred_fallthru
      _
    %v35 = vld [vmem:[#allocation2] sm:$0xff]
    %v36 = vld [vmem:[#allocation2 + $0x8] sm:$0xff]
    %v37 = vld [vmem:[#allocation2 + $0x10] sm:$0x7f]
    %v38 = vld [vmem:[%s1] sm:$0xff]
    %v39 = vld [vmem:[%s1 + $0x8] sm:$0x7f]
    %v40 = vld [vmem:[%s2] sm:$0xff]
    %v41 = vld [vmem:[%s2 + $0x8] sm:$0x7f]
    %43 = vset.pattern.permute.xlu0 0
    %44 = vperm.xlu0 %43, %v40
    %v45 = vpop.permute.xlu0 %44
    %48 = vset.pattern.permute.xlu0 0
    %49 = vperm.xlu0 %48, %v41
    %v50 = vpop.permute.xlu0 %49
    %vm52 = vcmask 187392
    %v54 = vsel %vm52, %v38, 0
    %v57 = vsel %vm52, %v39, 0
    %vm59 = vcmask 1046528
    %v61 = vsel %vm59, %v37, 0
    %63 = vmatprep.subr.mxu0 0.0
    %64 = vmatpush1.msra.mxu0 0.0
    %65 = vmatprep.subr.mxu0 0.0
    %66 = vmatpush1.msra.mxu0 0.0
    %67 = vmatprep.subr.mxu0 0.0
    %68 = vmatpush1.msra.mxu0 0.0
    %69 = vmatprep.subr.mxu0 0.0
    %70 = vmatpush1.msra.mxu0 0.0
    %71 = vmatprep.subr.mxu0 0.0
    %72 = vmatpush1.msra.mxu0 0.0
    %73 = vmatprep.subr.mxu0 0.0
    %74 = vmatpush1.msra.mxu0 0.0
    %75 = vmatprep.subr.mxu0 0.0
    %76 = vmatpush1.msra.mxu0 0.0
    %77 = vmatprep.subr.mxu0 0.0
    %78 = vmatpush1.msra.mxu0 0.0
    %79 = vmatprep.subr.mxu0 0.0
    %80 = vmatpush1.msra.mxu0 0.0
    %81 = vmatprep.subr.mxu0 0.0
    %82 = vmatpush1.msra.mxu0 0.0
    %83 = vmatprep.subr.mxu0 0.0
    %84 = vmatpush1.msra.mxu0 0.0
    %85 = vmatprep.subr.mxu0 0.0
    %86 = vmatpush1.msra.mxu0 0.0
    %87 = vmatprep.subr.mxu0 0.0
    %88 = vmatpush1.msra.mxu0 0.0
    %89 = vmatprep.subr.mxu0 0.0
    %90 = vmatpush1.msra.mxu0 %v61
    %91 = vmatprep.subr.mxu0 0.0
    %92 = vmatpush1.msra.mxu0 %v36
    %93 = vmatprep.subr.mxu0 0.0
    %94 = vmatpush1.msra.mxu0 %v35
    %95 = vmatprep.subr.mxu0 0.0
    %96 = vmatpush2.msra.mxu0 0.0
    %97 = vmatprep.subr.mxu0 0.0
    %98 = vmatpush2.msra.mxu0 0.0
    %99 = vmatprep.subr.mxu0 0.0
    %100 = vmatpush2.msra.mxu0 0.0
    %101 = vmatprep.subr.mxu0 0.0
    %102 = vmatpush2.msra.mxu0 0.0
    %103 = vmatprep.subr.mxu0 0.0
    %104 = vmatpush2.msra.mxu0 0.0
    %105 = vmatprep.subr.mxu0 0.0
    %106 = vmatpush2.msra.mxu0 0.0
    %107 = vmatprep.subr.mxu0 0.0
    %108 = vmatpush2.msra.mxu0 0.0
    %109 = vmatprep.subr.mxu0 0.0
    %110 = vmatpush2.msra.mxu0 0.0
    %111 = vmatprep.subr.mxu0 0.0
    %112 = vmatpush2.msra.mxu0 0.0
    %113 = vmatprep.subr.mxu0 0.0
    %114 = vmatpush2.msra.mxu0 0.0
    %115 = vmatprep.subr.mxu0 0.0
    %116 = vmatpush2.msra.mxu0 0.0
    %117 = vmatprep.subr.mxu0 0.0
    %118 = vmatpush2.msra.mxu0 0.0
    %119 = vmatprep.subr.mxu0 0.0
    %120 = vmatpush2.msra.mxu0 0.0
    %121 = vmatprep.subr.mxu0 0.0
    %122 = vmatpush2.msra.mxu0 0.0
    %123 = vmatprep.subr.mxu0 0.0
    %124 = vmatpush2.msra.mxu0 0.0
    %125 = vmatprep.subr.mxu0 0.0
    %126 = vmatpush2.msra.mxu0 0.0
    %127 = vmatprep.mubr.f32.mxu0 0.0
    %128 = vmatmul.mubr.f32.gmra.mxu0 %v54
    %v129 = vpop.f32.mrf.mxu0
    %v130 = vadd.f32 %v45, %v129
    %v131 = vpop.f32.mrf.mxu0
    %132 = vmatprep.mubr.f32.mxu0 0.0
    %133 = vmatmul.mubr.f32.gmra.mxu0 %v57
    %v134 = vpop.f32.mrf.mxu0
    %v135 = vadd.f32 %v50, %v134
    %v136 = vpop.f32.mrf.mxu0
    %137 = vdwg.mxu0
    %v138 = vmax.f32 %v130, 0.0
    %v139 = vmax.f32 %v135, 0.0
    %v140 = vld [vmem:[%s3] sm:$0x3]
    %v141 = vld [vmem:[%s4] sm:$0x3]
    %143 = vset.pattern.permute.xlu0 0
    %144 = vperm.xlu0 %143, %v141
    %v145 = vpop.permute.xlu0 %144
    %vm147 = vcmask 121856
    %v149 = vsel %vm147, %v140, 0
    %v152 = vsel %vm59, %v139, 0
    %154 = vmatprep.subr.mxu0 0.0
    %155 = vmatpush1.msra.mxu0 0.0
    %156 = vmatprep.subr.mxu0 0.0
    %157 = vmatpush1.msra.mxu0 0.0
    %158 = vmatprep.subr.mxu0 0.0
    %159 = vmatpush1.msra.mxu0 0.0
    %160 = vmatprep.subr.mxu0 0.0
    %161 = vmatpush1.msra.mxu0 0.0
    %162 = vmatprep.subr.mxu0 0.0
    %163 = vmatpush1.msra.mxu0 0.0
    %164 = vmatprep.subr.mxu0 0.0
    %165 = vmatpush1.msra.mxu0 0.0
    %166 = vmatprep.subr.mxu0 0.0
    %167 = vmatpush1.msra.mxu0 0.0
    %168 = vmatprep.subr.mxu0 0.0
    %169 = vmatpush1.msra.mxu0 0.0
    %170 = vmatprep.subr.mxu0 0.0
    %171 = vmatpush1.msra.mxu0 0.0
    %172 = vmatprep.subr.mxu0 0.0
    %173 = vmatpush1.msra.mxu0 0.0
    %174 = vmatprep.subr.mxu0 0.0
    %175 = vmatpush1.msra.mxu0 0.0
    %176 = vmatprep.subr.mxu0 0.0
    %177 = vmatpush1.msra.mxu0 0.0
    %178 = vmatprep.subr.mxu0 0.0
    %179 = vmatpush1.msra.mxu0 0.0
    %180 = vmatprep.subr.mxu0 0.0
    %181 = vmatpush1.msra.mxu0 0.0
    %182 = vmatprep.subr.mxu0 0.0
    %183 = vmatpush1.msra.mxu0 %v152
    %184 = vmatprep.subr.mxu0 0.0
    %185 = vmatpush1.msra.mxu0 %v138
    %186 = vmatprep.subr.mxu0 0.0
    %187 = vmatpush2.msra.mxu0 0.0
    %188 = vmatprep.subr.mxu0 0.0
    %189 = vmatpush2.msra.mxu0 0.0
    %190 = vmatprep.subr.mxu0 0.0
    %191 = vmatpush2.msra.mxu0 0.0
    %192 = vmatprep.subr.mxu0 0.0
    %193 = vmatpush2.msra.mxu0 0.0
    %194 = vmatprep.subr.mxu0 0.0
    %195 = vmatpush2.msra.mxu0 0.0
    %196 = vmatprep.subr.mxu0 0.0
    %197 = vmatpush2.msra.mxu0 0.0
    %198 = vmatprep.subr.mxu0 0.0
    %199 = vmatpush2.msra.mxu0 0.0
    %200 = vmatprep.subr.mxu0 0.0
    %201 = vmatpush2.msra.mxu0 0.0
    %202 = vmatprep.subr.mxu0 0.0
    %203 = vmatpush2.msra.mxu0 0.0
    %204 = vmatprep.subr.mxu0 0.0
    %205 = vmatpush2.msra.mxu0 0.0
    %206 = vmatprep.subr.mxu0 0.0
    %207 = vmatpush2.msra.mxu0 0.0
    %208 = vmatprep.subr.mxu0 0.0
    %209 = vmatpush2.msra.mxu0 0.0
    %210 = vmatprep.subr.mxu0 0.0
    %211 = vmatpush2.msra.mxu0 0.0
    %212 = vmatprep.subr.mxu0 0.0
    %213 = vmatpush2.msra.mxu0 0.0
    %214 = vmatprep.subr.mxu0 0.0
    %215 = vmatpush2.msra.mxu0 0.0
    %216 = vmatprep.subr.mxu0 0.0
    %217 = vmatpush2.msra.mxu0 0.0
    %218 = vmatprep.mubr.f32.mxu0 0.0
    %219 = vmatmul.mubr.f32.gmra.mxu0 %v149
    %v220 = vpop.f32.mrf.mxu0
    %v221 = vadd.f32 %v145, %v220
    %v222 = vpop.f32.mrf.mxu0
    %223 = vdwg.mxu0
    %224 = vst [vmem:[#allocation5] sm:$0x3] %v221
    // Predicated region
    $region26: #{tpu_custom_call.1} parent=1 // pred_check
      _
    $region27: #{tpu_custom_call.1} parent=1 // pred_check_branch
      %226 = sbr.rel (0) target = $region29
    $region28: #{tpu_custom_call.1} parent=1 // pred_region
      %s228 = ssub.s32 32, 32
      %229 = vsyncadd [#allocation4], %s228
      %s231 = sshll.u32 [#allocation5], 4
      %s232 = int_to_ptr.vmem [resolvable:$true] %s231
      %234 = dma.vmem_to_hbm [thread:$0]  %s232, 32, %s5, [#allocation4]
    $region29: #{tpu_custom_call.1} parent=1 // pred_fallthru
      _
    // Predicated region
    $region30: #{tpu_custom_call.1} parent=1 // pred_check
      _
    $region31: #{tpu_custom_call.1} parent=1 // pred_check_branch
      %236 = sbr.rel (0) target = $region33
    $region32: #{tpu_custom_call.1} parent=1 // pred_region
      %237 = dma.done [#allocation4], 32
    $region33: #{tpu_custom_call.1} parent=1 // pred_fallthru
      _
    %238 = vsyncpa [#allocation3], 1
    %239 = vsyncpa [#allocation4], 1

</llo_original>
